<compile_context>
chip_gen: v7x
topology: tpu7x:2x2x1
jax: 0.10.0
libtpu: 0.0.40
codegen_flags: <defaults>
</compile_context>

<pallas_src>
import jax
import jax.numpy as jnp
import numpy as np
from jax.experimental import pallas as pl
from jax.experimental.pallas import tpu as pltpu

NUM_CLASSES = 10          # args.num_classes (CIFAR-10)
SMOOTHING = 0.13
IGNORE_INDEX = -1


def _round_up(x, m):
    return ((x + m - 1) // m) * m


def _celoss_ls_kernel(params_ref, ncols_ref, logits_ref, target_ref,
                      loss_ref, cnt_ref):
    i = pl.program_id(0)
    tn = logits_ref.shape[1]

    new_complement = params_ref[0]       # 1 - (smoothing + ad/100)
    uniform_w = params_ref[1]            # (smoothing + ad/100) / C
    n_valid_cols = ncols_ref[0]          # number of real (un-padded) samples

    logits = logits_ref[...].astype(jnp.float32)       # (C, TN)
    tgt = target_ref[...]                               # (1, TN) int32

    # log-softmax over the class (sublane) axis, numerically stable
    m = jnp.max(logits, axis=0, keepdims=True)          # (1, TN)
    z = logits - m
    lse = jnp.log(jnp.sum(jnp.exp(z), axis=0, keepdims=True))   # (1, TN)

    # Smoothed-label CE without materializing one-hot / smoothed labels:
    #   loss = -(complement * logs[target] + u * sum_c logs[c])
    # with logs = z - lse and sum_c logs[c] = sum_c z[c] - C * lse.
    cls_ids = jax.lax.broadcasted_iota(jnp.int32, logits.shape, 0)     # (C, TN)
    z_at_t = jnp.sum(jnp.where(cls_ids == tgt, z, 0.0), axis=0, keepdims=True)
    sum_logs = jnp.sum(z, axis=0, keepdims=True) - NUM_CLASSES * lse
    per_col = -(new_complement * (z_at_t - lse) + uniform_w * sum_logs)  # (1, TN)

    # valid = real sample (not OOB / padded tail) and target != ignore_index
    col = i * tn + jax.lax.broadcasted_iota(jnp.int32, (1, tn), 1)
    valid = (tgt != IGNORE_INDEX) & (col < n_valid_cols)

    loss_ref[...] = jnp.sum(jnp.where(valid, per_col, 0.0)).reshape(1, 1, 1)
    cnt_ref[...] = jnp.sum(valid.astype(jnp.float32)).reshape(1, 1, 1)


def celoss_with_ls(logits, target, ad, *, tn=8192):
    """logits: (N, C) float32 or bfloat16, target: (N,) int, ad: scalar."""
    N, C = logits.shape
    assert C == NUM_CLASSES

    # Lane tile: multiple of 128, clamped to the (128-padded) batch size.
    n_pad = _round_up(N, 128)
    tn = max(128, min(_round_up(tn, 128), n_pad))
    grid = (n_pad + tn - 1) // tn

    # Lane-dense layout: batch -> lanes, classes -> sublanes.  Pad the batch axis
    # to a lane-tile granularity with defined values (0 logits, IGNORE_INDEX targets).
    logits_t = jnp.pad(jnp.transpose(logits), ((0, 0), (0, n_pad - N)))
    target_p = jnp.pad(target.astype(jnp.int32), (0, n_pad - N),
                       constant_values=IGNORE_INDEX).reshape(1, n_pad)

    # Smoothing scalars hoisted out of the kernel.
    ad_f = jnp.asarray(ad, jnp.float32)
    new_smoothing = SMOOTHING + ad_f / 100.0
    params = jnp.stack([1.0 - new_smoothing, new_smoothing / NUM_CLASSES])
    ncols = jnp.asarray([N], jnp.int32)

    grid_spec = pltpu.PrefetchScalarGridSpec(
        num_scalar_prefetch=0,
        grid=(grid,),
        in_specs=[
            pl.BlockSpec(memory_space=pltpu.MemorySpace.SMEM),      # params (2,) f32
            pl.BlockSpec(memory_space=pltpu.MemorySpace.SMEM),      # ncols  (1,) i32
            pl.BlockSpec((NUM_CLASSES, tn), lambda i: (0, i)),      # logits tile
            pl.BlockSpec((1, tn), lambda i: (0, i)),                # target tile
        ],
        out_specs=[
            pl.BlockSpec((1, 1, 1), lambda i: (i, 0, 0)),           # per-tile loss sum
            pl.BlockSpec((1, 1, 1), lambda i: (i, 0, 0)),           # per-tile valid count
        ],
    )

    loss_parts, cnt_parts = pl.pallas_call(
        _celoss_ls_kernel,
        out_shape=(
            jax.ShapeDtypeStruct((grid, 1, 1), jnp.float32),
            jax.ShapeDtypeStruct((grid, 1, 1), jnp.float32),
        ),
        grid_spec=grid_spec,
        compiler_params=pltpu.CompilerParams(
            dimension_semantics=("parallel",),        # independent tiles -> megacore OK
            vmem_limit_bytes=32 * 1024 * 1024,
        ),
    )(params, ncols, logits_t, target_p)

    # Final reduction + mean are trivial glue; NaN if no valid target (matches torch).
    return jnp.sum(loss_parts) / jnp.sum(cnt_parts)


def _reference(logits, target, ad):
    new_s = SMOOTHING + ad / 100.0
    new_c = 1.0 - new_s
    oh = jax.nn.one_hot(target, NUM_CLASSES, dtype=jnp.float32)
    sm = oh * new_c + new_s / NUM_CLASSES
    mask = target != IGNORE_INDEX
    logs = jax.nn.log_softmax(logits[mask].astype(jnp.float32), axis=1)
    return jnp.mean(-jnp.sum(logs * sm[mask], axis=1))


if __name__ == "__main__":
    key = jax.random.PRNGKey(0)
    k1, k2 = jax.random.split(key)
    ad = jnp.float32(2.0)

    # Case 1: small batch (N=16) — exercises lane-tail masking inside one 128-lane tile.
    N = 16
    logits = jax.random.normal(k1, (N, NUM_CLASSES), dtype=jnp.float32)
    target = jax.random.randint(k2, (N,), 0, NUM_CLASSES, dtype=jnp.int32)
    target = target.at[3].set(IGNORE_INDEX)          # exercise ignore_index masking
    loss = jax.block_until_ready(celoss_with_ls(logits, target, ad))
    ref = _reference(logits, target, float(ad))
    if not np.allclose(np.asarray(loss), np.asarray(ref), rtol=1e-4, atol=1e-4):
        raise AssertionError(f"mismatch (f32 small): kernel={loss} ref={ref}")

    # Case 2: ragged multi-tile batch (N=300, tn=128 -> grid=3, partial last tile).
    k3, k4 = jax.random.split(k1)
    N2 = 300
    logits2 = jax.random.normal(k3, (N2, NUM_CLASSES), dtype=jnp.float32)
    target2 = jax.random.randint(k4, (N2,), 0, NUM_CLASSES, dtype=jnp.int32)
    target2 = target2.at[7].set(IGNORE_INDEX)
    loss2 = jax.block_until_ready(celoss_with_ls(logits2, target2, ad, tn=128))
    ref2 = _reference(logits2, target2, float(ad))
    if not np.allclose(np.asarray(loss2), np.asarray(ref2), rtol=1e-4, atol=1e-4):
        raise AssertionError(f"mismatch (f32 ragged): kernel={loss2} ref={ref2}")

    # Case 3: bf16 logits input (halves HBM traffic); in-kernel math stays f32.
    logits_bf16 = logits2.astype(jnp.bfloat16)
    loss3 = jax.block_until_ready(celoss_with_ls(logits_bf16, target2, ad, tn=128))
    ref3 = _reference(logits_bf16, target2, float(ad))
    if not np.allclose(np.asarray(loss3), np.asarray(ref3), rtol=1e-3, atol=1e-3):
        raise AssertionError(f"mismatch (bf16): kernel={loss3} ref={ref3}")

    print("KERNEL_OK")
</pallas_src>

<mosaic_0001>
module attributes {stable_mosaic.version = 11 : i64} {
  func.func @_celoss_ls_kernel(%arg0: i32, %arg1: memref<2xf32, #tpu.memory_space<smem>>, %arg2: memref<1xi32, #tpu.memory_space<smem>>, %arg3: memref<10x128xf32, #tpu.memory_space<vmem>>, %arg4: memref<1x128xi32, #tpu.memory_space<vmem>>, %arg5: memref<1x1x1xf32, #tpu.memory_space<vmem>>, %arg6: memref<1x1x1xf32, #tpu.memory_space<vmem>>) attributes {dimension_semantics = [#tpu.dimension_semantics<parallel>], iteration_bounds = array<i64: 1>, scalar_prefetch = 0 : i64, scratch_operands = 0 : i64, tpu.core_type = #tpu.core_type<tc>, window_params = [{transform_indices = @transform_0, window_bounds = array<i64: 2>}, {transform_indices = @transform_1, window_bounds = array<i64: 1>}, {transform_indices = @transform_2, window_bounds = array<i64: 10, 128>}, {transform_indices = @transform_3, window_bounds = array<i64: 1, 128>}, {transform_indices = @transform_4, window_bounds = array<i64: 1, 1, 1>}, {transform_indices = @transform_5, window_bounds = array<i64: 1, 1, 1>}]} {
    %c0 = arith.constant 0 : index
    %0 = memref.load %arg1[%c0] : memref<2xf32, #tpu.memory_space<smem>>
    %c1 = arith.constant 1 : index
    %1 = memref.load %arg1[%c1] : memref<2xf32, #tpu.memory_space<smem>>
    %c0_0 = arith.constant 0 : index
    %2 = memref.load %arg2[%c0_0] : memref<1xi32, #tpu.memory_space<smem>>
    %c0_1 = arith.constant 0 : index
    %c0_2 = arith.constant 0 : index
    %3 = vector.load %arg3[%c0_1, %c0_2] : memref<10x128xf32, #tpu.memory_space<vmem>>, vector<10x128xf32>
    %c0_3 = arith.constant 0 : index
    %c0_4 = arith.constant 0 : index
    %4 = vector.load %arg4[%c0_3, %c0_4] : memref<1x128xi32, #tpu.memory_space<vmem>>, vector<1x128xi32>
    %cst = arith.constant dense<0xFF800000> : vector<128xf32>
    %5 = vector.multi_reduction <maximumf>, %3, %cst [0] : vector<10x128xf32> to vector<128xf32>
    %6 = vector.shape_cast %5 : vector<128xf32> to vector<1x128xf32>
    %7 = vector.broadcast %6 : vector<1x128xf32> to vector<10x128xf32>
    %8 = arith.subf %3, %7 : vector<10x128xf32>
    %9 = math.exp %8 : vector<10x128xf32>
    %cst_5 = arith.constant dense<0.000000e+00> : vector<128xf32>
    %10 = vector.multi_reduction <add>, %9, %cst_5 [0] : vector<10x128xf32> to vector<128xf32>
    %11 = vector.shape_cast %10 : vector<128xf32> to vector<1x128xf32>
    %12 = math.log %11 : vector<1x128xf32>
    %13 = tpu.iota {dimensions = array<i32: 0>} : vector<10x128xi32>
    %14 = vector.broadcast %4 : vector<1x128xi32> to vector<10x128xi32>
    %15 = arith.cmpi eq, %13, %14 : vector<10x128xi32>
    %cst_6 = arith.constant 0.000000e+00 : f32
    %16 = vector.broadcast %cst_6 : f32 to vector<10x128xf32>
    %17 = arith.select %15, %8, %16 : vector<10x128xi1>, vector<10x128xf32>
    %cst_7 = arith.constant dense<0.000000e+00> : vector<128xf32>
    %18 = vector.multi_reduction <add>, %17, %cst_7 [0] : vector<10x128xf32> to vector<128xf32>
    %19 = vector.shape_cast %18 : vector<128xf32> to vector<1x128xf32>
    %cst_8 = arith.constant dense<0.000000e+00> : vector<128xf32>
    %20 = vector.multi_reduction <add>, %8, %cst_8 [0] : vector<10x128xf32> to vector<128xf32>
    %21 = vector.shape_cast %20 : vector<128xf32> to vector<1x128xf32>
    %cst_9 = arith.constant 1.000000e+01 : f32
    %22 = vector.broadcast %cst_9 : f32 to vector<1x128xf32>
    %23 = arith.mulf %22, %12 : vector<1x128xf32>
    %24 = arith.subf %21, %23 : vector<1x128xf32>
    %25 = arith.subf %19, %12 : vector<1x128xf32>
    %26 = vector.broadcast %0 : f32 to vector<1x128xf32>
    %27 = arith.mulf %26, %25 : vector<1x128xf32>
    %28 = vector.broadcast %1 : f32 to vector<1x128xf32>
    %29 = arith.mulf %28, %24 : vector<1x128xf32>
    %30 = arith.addf %27, %29 : vector<1x128xf32>
    %cst_10 = arith.constant 0.000000e+00 : f32
    %31 = vector.broadcast %cst_10 : f32 to vector<1x128xf32>
    %32 = arith.subf %31, %30 : vector<1x128xf32>
    %c128_i32 = arith.constant 128 : i32
    %33 = arith.muli %arg0, %c128_i32 : i32
    %34 = tpu.iota {dimensions = array<i32: 1>} : vector<1x128xi32>
    %35 = vector.broadcast %33 : i32 to vector<1x128xi32>
    %36 = arith.addi %35, %34 : vector<1x128xi32>
    %c-1_i32 = arith.constant -1 : i32
    %37 = vector.broadcast %c-1_i32 : i32 to vector<1x128xi32>
    %38 = arith.cmpi ne, %4, %37 : vector<1x128xi32>
    %39 = vector.broadcast %2 : i32 to vector<1x128xi32>
    %40 = arith.cmpi slt, %36, %39 : vector<1x128xi32>
    %41 = arith.andi %38, %40 : vector<1x128xi1>
    %cst_11 = arith.constant 0.000000e+00 : f32
    %42 = vector.broadcast %cst_11 : f32 to vector<1x128xf32>
    %43 = arith.select %41, %32, %42 : vector<1x128xi1>, vector<1x128xf32>
    %44 = vector.shape_cast %43 : vector<1x128xf32> to vector<1x1x128xf32>
    %cst_12 = arith.constant dense<0.000000e+00> : vector<1xf32>
    %45 = vector.multi_reduction <add>, %44, %cst_12 [1, 2] : vector<1x1x128xf32> to vector<1xf32>
    %46 = vector.shape_cast %45 : vector<1xf32> to vector<1x1x1xf32>
    %47 = vector.extract %46[0, 0, 0] : f32 from vector<1x1x1xf32>
    %48 = vector.broadcast %47 : f32 to vector<1x1x1xf32>
    %c0_13 = arith.constant 0 : index
    %c0_14 = arith.constant 0 : index
    %c0_15 = arith.constant 0 : index
    %49 = vector.load %arg5[%c0_13, %c0_14, %c0_15] : memref<1x1x1xf32, #tpu.memory_space<vmem>>, vector<1x1x1xf32>
    tpu.vector_store %arg5[%c0_13, %c0_14, %c0_15], %48 {strides = array<i32>} : memref<1x1x1xf32, #tpu.memory_space<vmem>>, vector<1x1x1xf32>,
    %50 = arith.extui %41 : vector<1x128xi1> to vector<1x128xi32>
    %51 = arith.sitofp %50 : vector<1x128xi32> to vector<1x128xf32>
    %52 = vector.shape_cast %51 : vector<1x128xf32> to vector<1x1x128xf32>
    %cst_16 = arith.constant dense<0.000000e+00> : vector<1xf32>
    %53 = vector.multi_reduction <add>, %52, %cst_16 [1, 2] : vector<1x1x128xf32> to vector<1xf32>
    %54 = vector.shape_cast %53 : vector<1xf32> to vector<1x1x1xf32>
    %55 = vector.extract %54[0, 0, 0] : f32 from vector<1x1x1xf32>
    %56 = vector.broadcast %55 : f32 to vector<1x1x1xf32>
    %c0_17 = arith.constant 0 : index
    %c0_18 = arith.constant 0 : index
    %c0_19 = arith.constant 0 : index
    %57 = vector.load %arg6[%c0_17, %c0_18, %c0_19] : memref<1x1x1xf32, #tpu.memory_space<vmem>>, vector<1x1x1xf32>
    tpu.vector_store %arg6[%c0_17, %c0_18, %c0_19], %56 {strides = array<i32>} : memref<1x1x1xf32, #tpu.memory_space<vmem>>, vector<1x1x1xf32>,
    return
  }
  func.func @transform_0(%arg0: i32) -> i32 {
    %c0_i32 = arith.constant 0 : i32
    %c0_i32_0 = arith.constant 0 : i32
    return %c0_i32 : i32
  }
  func.func @transform_1(%arg0: i32) -> i32 {
    %c0_i32 = arith.constant 0 : i32
    %c0_i32_0 = arith.constant 0 : i32
    return %c0_i32 : i32
  }
  func.func @transform_2(%arg0: i32) -> (i32, i32) {
    %c0_i32 = arith.constant 0 : i32
    %c0_i32_0 = arith.constant 0 : i32
    return %c0_i32, %arg0 : i32, i32
  }
  func.func @transform_3(%arg0: i32) -> (i32, i32) {
    %c0_i32 = arith.constant 0 : i32
    %c0_i32_0 = arith.constant 0 : i32
    return %c0_i32, %arg0 : i32, i32
  }
  func.func @transform_4(%arg0: i32) -> (i32, i32, i32) {
    %c0_i32 = arith.constant 0 : i32
    %c0_i32_0 = arith.constant 0 : i32
    %c0_i32_1 = arith.constant 0 : i32
    return %arg0, %c0_i32, %c0_i32_0 : i32, i32, i32
  }
  func.func @transform_5(%arg0: i32) -> (i32, i32, i32) {
    %c0_i32 = arith.constant 0 : i32
    %c0_i32_0 = arith.constant 0 : i32
    %c0_i32_1 = arith.constant 0 : i32
    return %arg0, %c0_i32, %c0_i32_0 : i32, i32, i32
  }
}

</mosaic_0001>

<llo_original>
// kernel: tpu_custom_call.1
$region0: #{tpu_custom_call.1}
  #allocation0 [shape = 'u32[]', space=smem, size = 0x4, offset = 0x4, fixed_abs, tag = 'smem constant byte address 0x4 - core index']
  #allocation1 [shape = 'u32[144,128]{1,0:T(1,128)}', space=vmem, size = 0x12000, scoped, tag = 'internal scratch']
  #allocation2 [shape = 's32[1]{0:T(128)S(6)}', space=smem, size = 0x200, scoped, tag = 'scoped memory for tpu_custom_call.1']
  %s0 = inlined_call_operand.vmem [shape: f32[2], index: 0, kind: input, shape index: {}]
  %s1 = inlined_call_operand.<no memory space> [shape: s32[1], index: 1, kind: input, shape index: {}]
  %s2 = inlined_call_operand.hbm [shape: f32[10,128], index: 2, kind: input, shape index: {}]
  %s3 = inlined_call_operand.vmem [shape: s32[1,128], index: 3, kind: input, shape index: {}]
  %s4 = inlined_call_operand.hbm [shape: f32[1,1,1], index: 4, kind: output, shape index: {0}]
  %s5 = inlined_call_operand.hbm [shape: f32[1,1,1], index: 5, kind: output, shape index: {1}]
  %6 = xla_tuple %s4, %s5
  %s7 = sld [smem:[#allocation0]]
  $region42: #{tpu_custom_call.1} parent=0
    _
  %s9 = ssub.s32 1, %s7
  %s10 = scalar_select 0, %s9, %s7
  %11 = sst [smem:[#allocation2]] %s1
  $region1: #{tpu_custom_call.1} parent=0
    #allocation3 [shape = 'u8[512]{0}', space=smem, size = 0x200, scoped, tag = 'input window, operand 0, single buffered']
    #allocation4 [shape = 's32[1]{0}', space=sflag, size = 0x4, scoped, tag = 'scoped memory for tpu_custom_call.1']
    #allocation5 [shape = 's32[1]{0}', space=sflag, size = 0x4, scoped, tag = 'scoped memory for tpu_custom_call.1']
    #allocation6 [shape = 's32[1]{0}', space=sflag, size = 0x4, scoped, tag = 'scoped memory for tpu_custom_call.1']
    #allocation7 [shape = 'u8[8192]{0}', space=vmem, size = 0x2000, scoped, tag = 'input window, operand 2, single buffered']
    #allocation8 [shape = 'u8[512]{0}', space=vmem, size = 0x400, scoped, tag = 'output window, operand 0, single buffered']
    #allocation9 [shape = 'u8[512]{0}', space=vmem, size = 0x400, scoped, tag = 'output window, operand 1, single buffered']
    #allocation10 [shape = 's32[1]{0}', space=sflag, size = 0x4, scoped, tag = 'scoped memory for tpu_custom_call.1']
    %12 = vsyncpa [#allocation6], 0
    %13 = vsyncpa [#allocation4], 0
    %14 = vsyncpa [#allocation5], 0
    %15 = vsyncpa [#allocation10], 0
    // Predicated region
    $region2: #{tpu_custom_call.1} parent=1 // pred_check
      _
    $region3: #{tpu_custom_call.1} parent=1 // pred_check_branch
      %17 = sbr.rel (0) target = $region5
    $region4: #{tpu_custom_call.1} parent=1 // pred_region
      %s19 = ssub.s32 16, 16
      %20 = vsyncadd [#allocation6], %s19
      %s22 = sshll.u32 %s0, 4
      %s23 = int_to_ptr.vmem [resolvable:$true] %s22
      %25 = dma.vmem_to_smem %s23, 16, [#allocation3], [#allocation6]
    $region5: #{tpu_custom_call.1} parent=1 // pred_fallthru
      _
    // Predicated region
    $region6: #{tpu_custom_call.1} parent=1 // pred_check
      _
    $region7: #{tpu_custom_call.1} parent=1 // pred_check_branch
      %27 = sbr.rel (0) target = $region9
    $region8: #{tpu_custom_call.1} parent=1 // pred_region
      _
    $region9: #{tpu_custom_call.1} parent=1 // pred_fallthru
      _
    // Predicated region
    $region10: #{tpu_custom_call.1} parent=1 // pred_check
      _
    $region11: #{tpu_custom_call.1} parent=1 // pred_check_branch
      %29 = sbr.rel (0) target = $region13
    $region12: #{tpu_custom_call.1} parent=1 // pred_region
      %s31 = ssub.s32 256, 256
      %32 = vsyncadd [#allocation4], %s31
      %s33 = sshll.u32 [#allocation7], 4
      %s34 = int_to_ptr.vmem [resolvable:$true] %s33
      %39 = dma.hbm_to_vmem [thread:$0]  %s2, 256, %s34, [#allocation4], 128, 128, 8
    $region13: #{tpu_custom_call.1} parent=1 // pred_fallthru
      _
    // Predicated region
    $region14: #{tpu_custom_call.1} parent=1 // pred_check
      _
    $region15: #{tpu_custom_call.1} parent=1 // pred_check_branch
      %41 = sbr.rel (0) target = $region17
    $region16: #{tpu_custom_call.1} parent=1 // pred_region
      _
    $region17: #{tpu_custom_call.1} parent=1 // pred_fallthru
      _
    // Predicated region
    $region18: #{tpu_custom_call.1} parent=1 // pred_check
      _
    $region19: #{tpu_custom_call.1} parent=1 // pred_check_branch
      %43 = sbr.rel (0) target = $region21
    $region20: #{tpu_custom_call.1} parent=1 // pred_region
      %44 = dma.done [#allocation6], 16
    $region21: #{tpu_custom_call.1} parent=1 // pred_fallthru
      _
    // Predicated region
    $region22: #{tpu_custom_call.1} parent=1 // pred_check
      _
    $region23: #{tpu_custom_call.1} parent=1 // pred_check_branch
      %46 = sbr.rel (0) target = $region25
    $region24: #{tpu_custom_call.1} parent=1 // pred_region
      %47 = dma.done [#allocation4], 256
    $region25: #{tpu_custom_call.1} parent=1 // pred_fallthru
      _
    %48 = sfence
    %s49 = sld [smem:[#allocation3]]
    %s50 = sld [smem:[#allocation3 + $0x1]]
    %s51 = sld [smem:[#allocation2]]
    %v52 = vld [vmem:[#allocation7] sm:$0xff]
    %v53 = vld [vmem:[#allocation7 + $0x8] sm:$0x3]
    %v54 = vld [vmem:[%s3] sm:$0x1]
    %vm55 = vcmask 1041408
    %v56 = vsel %vm55, %v53, -inf
    %v57 = vmax.f32 %v52, %v56
    %v58 = vrot.slane %v57, 4
    %v59 = vmax.f32 %v57, %v58
    %v60 = vrot.slane %v59, 2
    %v61 = vmax.f32 %v59, %v60
    %v62 = vrot.slane %v61, 1
    %v63 = vmax.f32 %v61, %v62
    %v64 = vsub.f32 %v52, %v63
    %v65 = vsub.f32 %v53, %v63
    %v66 = vmul.f32 %v64, 1.442695
    %v67 = vpow.pop %v66
    %v68 = vmul.f32 %v65, 1.442695
    %v69 = vpow.pop %v68
    %v70 = vsel %vm55, %v69, 0.0
    %v71 = vadd.f32 %v67, %v70
    %v72 = vrot.slane %v71, 4
    %v73 = vadd.f32 %v71, %v72
    %v74 = vrot.slane %v73, 2
    %v75 = vadd.f32 %v73, %v74
    %v76 = vrot.slane %v75, 1
    %v77 = vadd.f32 %v75, %v76
    %v78 = vlog2.pop %v77
    %v79 = vmul.f32 %v78, 0.6931472
    %v80 = vlaneseq
    %v81 = vshrl.u32 %v80, 7
    %v82 = vadd.s32 %v81, 8
    %v83 = vlaneseq
    %v84 = vshrl.u32 %v83, 7
    %v85 = vsub.s32 0, %v84
    %v86 = vrot.slane %v54, %v85
    %vm87 = vcmp.eq.s32.totalorder %v81, %v86
    %vm88 = vcmp.eq.s32.totalorder %v82, %v86
    %v89 = vsel %vm87, %v64, 0.0
    %v90 = vsel %vm88, %v65, 0.0
    %v91 = vsel %vm55, %v90, 0.0
    %v92 = vadd.f32 %v89, %v91
    %v93 = vrot.slane %v92, 4
    %v94 = vadd.f32 %v92, %v93
    %v95 = vrot.slane %v94, 2
    %v96 = vadd.f32 %v94, %v95
    %v97 = vrot.slane %v96, 1
    %v98 = vadd.f32 %v96, %v97
    %v99 = vsel %vm55, %v65, 0.0
    %v100 = vadd.f32 %v64, %v99
    %v101 = vrot.slane %v100, 4
    %v102 = vadd.f32 %v100, %v101
    %v103 = vrot.slane %v102, 2
    %v104 = vadd.f32 %v102, %v103
    %v105 = vrot.slane %v104, 1
    %v106 = vadd.f32 %v104, %v105
    %v107 = vmul.f32 %v79, 10.0
    %v108 = vsub.f32 %v106, %v107
    %v109 = vsub.f32 %v98, %v79
    %v110 = vstv %s49
    %v111 = vmul.f32 %v110, %v109
    %v112 = vstv %s50
    %v113 = vmul.f32 %v112, %v108
    %v114 = vadd.f32 %v111, %v113
    %v115 = vsub.f32 0.0, %v114
    %s116 = smul.u32 0, 128
    %v117 = vlaneseq
    %v118 = vand.u32 %v117, 127
    %v119 = vstv %s116
    %v120 = vadd.s32 %v119, %v118
    %vm121 = vcmp.ne.s32.totalorder %v54, 4294967295
    %v122 = vstv %s51
    %vm123 = vcmp.lt.s32.totalorder %v120, %v122
    %vm124 = vmand %vm121, %vm123
    %v125 = vsel %vm124, %v115, 0.0
    %vm126 = vcmask 1040384
    %v127 = vsel %vm126, %v125, 0.0
    %128 = vadd.xlane.f32.xlu0 %v127
    %v129 = vpop.xlane.xlu0 %128
    %v130 = vrot.slane %v129, 4
    %v131 = vadd.f32 %v129, %v130
    %v132 = vrot.slane %v131, 2
    %v133 = vadd.f32 %v131, %v132
    %v134 = vrot.slane %v133, 1
    %v135 = vadd.f32 %v133, %v134
    %s136 = vtos %v135
    %v137 = vstv %s136
    %vm138 = vcmask 0
    %139 = vst.msk [vmem:[#allocation8] sm:$0x1] %vm138, %v137
    %v140 = vsel %vm124, 1, 0
    %v141 = vcvt.s32.f32 %v140
    %v142 = vsel %vm126, %v141, 0.0
    %143 = vadd.xlane.f32.xlu0 %v142
    %v144 = vpop.xlane.xlu0 %143
    %v145 = vrot.slane %v144, 4
    %v146 = vadd.f32 %v144, %v145
    %v147 = vrot.slane %v146, 2
    %v148 = vadd.f32 %v146, %v147
    %v149 = vrot.slane %v148, 1
    %v150 = vadd.f32 %v148, %v149
    %s151 = vtos %v150
    %v152 = vstv %s151
    %153 = vst.msk [vmem:[#allocation9] sm:$0x1] %vm138, %v152
    // Predicated region
    $region26: #{tpu_custom_call.1} parent=1 // pred_check
      _
    $region27: #{tpu_custom_call.1} parent=1 // pred_check_branch
      %155 = sbr.rel (0) target = $region29
    $region28: #{tpu_custom_call.1} parent=1 // pred_region
      %s157 = ssub.s32 16, 16
      %158 = vsyncadd [#allocation5], %s157
      %s160 = sshll.u32 [#allocation8], 4
      %s161 = int_to_ptr.vmem [resolvable:$true] %s160
      %163 = dma.vmem_to_hbm [thread:$0]  %s161, 16, %s4, [#allocation5]
    $region29: #{tpu_custom_call.1} parent=1 // pred_fallthru
      _
    // Predicated region
    $region30: #{tpu_custom_call.1} parent=1 // pred_check
      _
    $region31: #{tpu_custom_call.1} parent=1 // pred_check_branch
      %165 = sbr.rel (0) target = $region33
    $region32: #{tpu_custom_call.1} parent=1 // pred_region
      %s167 = ssub.s32 16, 16
      %168 = vsyncadd [#allocation10], %s167
      %s170 = sshll.u32 [#allocation9], 4
      %s171 = int_to_ptr.vmem [resolvable:$true] %s170
      %173 = dma.vmem_to_hbm [thread:$0]  %s171, 16, %s5, [#allocation10]
    $region33: #{tpu_custom_call.1} parent=1 // pred_fallthru
      _
    // Predicated region
    $region34: #{tpu_custom_call.1} parent=1 // pred_check
      _
    $region35: #{tpu_custom_call.1} parent=1 // pred_check_branch
      %175 = sbr.rel (0) target = $region37
    $region36: #{tpu_custom_call.1} parent=1 // pred_region
      %176 = dma.done [#allocation5], 16
    $region37: #{tpu_custom_call.1} parent=1 // pred_fallthru
      _
    // Predicated region
    $region38: #{tpu_custom_call.1} parent=1 // pred_check
      _
    $region39: #{tpu_custom_call.1} parent=1 // pred_check_branch
      %178 = sbr.rel (0) target = $region41
    $region40: #{tpu_custom_call.1} parent=1 // pred_region
      %179 = dma.done [#allocation10], 16
    $region41: #{tpu_custom_call.1} parent=1 // pred_fallthru
      _
    %180 = vsyncpa [#allocation4], 1
    %181 = vsyncpa [#allocation5], 1
    %182 = vsyncpa [#allocation10], 1
    %183 = vsyncpa [#allocation6], 1

</llo_original>
